<compile_context>
chip_gen: v6e
topology: v6e:2x2x1
jax: 0.10.0
libtpu: 0.0.40
codegen_flags: <defaults>
</compile_context>

<pallas_src>
import functools

import jax
import jax.numpy as jnp
from jax.experimental import pallas as pl
from jax.experimental.pallas import tpu as pltpu


def _round_up(x, m):
    return ((x + m - 1) // m) * m


def _vmem_limit(need_bytes):
    # generous margin, capped well under v7x's 64 MiB physical VMEM
    return int(min(max(2 * need_bytes, 16 * 2**20), 48 * 2**20))


# ---------------------------------------------------------------------------
# Fused path: VMEM-resident table, in-kernel gather + mean + streamed matmul
# ---------------------------------------------------------------------------
def fused_cbow_kernel(ids_ref, emb_ref, w_ref, b_ref, o_ref, means_sc,
                      *, n_rows, c_len, inv_c):
    """grid = (V_pad // TN,).  The f32 means scratch is filled once at the first
    vocab tile (cross-step dependency -> axis is 'arbitrary') and reused; each
    (E, TN) weight block is read exactly once."""

    @pl.when(pl.program_id(0) == 0)
    def _():
        means_sc[...] = jnp.zeros_like(means_sc)          # padded rows -> 0
        for r in range(n_rows):                           # real rows only (static)
            base = r * c_len
            acc = emb_ref[pl.ds(ids_ref[base], 1), :]     # (1, E) f32 row
            for c in range(1, c_len):
                acc = acc + emb_ref[pl.ds(ids_ref[base + c], 1), :]
            means_sc[pl.ds(r, 1), :] = acc * inv_c

    x = means_sc[...].astype(w_ref.dtype)
    o_ref[...] = (
        jnp.dot(x, w_ref[...], preferred_element_type=jnp.float32) + b_ref[...]
    ).astype(o_ref.dtype)


# ---------------------------------------------------------------------------
# General path, phase 1: HBM embedding gather + context mean (f32 output)
# ---------------------------------------------------------------------------
def gather_mean_kernel(ids_ref, emb_hbm, means_ref, buf, sems,
                       *, tb, c_len, n_rows, inv_c):
    """One grid step gathers `tb` batch rows (tb*c_len embedding rows) from the
    HBM table via concurrent row DMAs, then reduces over the context axis in
    f32.  Padded batch rows (>= n_rows) are skipped entirely."""
    i = pl.program_id(0)

    # Issue all row DMAs for this tile (skip padded rows).
    for r in range(tb):
        row = i * tb + r

        @pl.when(row < n_rows)
        def _start(r=r, row=row):
            base = row * c_len
            for c in range(c_len):
                tok = ids_ref[base + c]                    # scalar read from SMEM
                pltpu.make_async_copy(
                    emb_hbm.at[pl.ds(tok, 1)],             # (1, E) row in HBM
                    buf.at[pl.ds(c * tb + r, 1)],          # (1, E) row in VMEM
                    sems.at[c],
                ).start()

    # Wait for them under the same guard so signals and waits balance per sem
    # (all copies on a given sem have identical byte counts).
    for r in range(tb):
        row = i * tb + r

        @pl.when(row < n_rows)
        def _wait(r=r):
            for c in range(c_len):
                pltpu.make_async_copy(
                    emb_hbm.at[pl.ds(0, 1)],
                    buf.at[pl.ds(c * tb + r, 1)],
                    sems.at[c],
                ).wait()

    # Mean over the context axis, accumulated in f32 (VALU adds of (tb, E) slabs).
    acc = buf[pl.ds(0, tb)].astype(jnp.float32)
    for c in range(1, c_len):
        acc = acc + buf[pl.ds(c * tb, tb)].astype(jnp.float32)
    means_ref[...] = acc * inv_c


# ---------------------------------------------------------------------------
# General path, phase 2: (B, E) @ (E, V) + bias, vocab-outer / batch-inner grid
# ---------------------------------------------------------------------------
def matmul_bias_kernel(x_ref, w_ref, b_ref, o_ref):
    x = x_ref[...].astype(w_ref.dtype)
    o_ref[...] = (
        jnp.dot(x, w_ref[...], preferred_element_type=jnp.float32) + b_ref[...]
    ).astype(o_ref.dtype)


# ---------------------------------------------------------------------------
# Wrapper
# ---------------------------------------------------------------------------
def cbow_forward(ids, emb_table, w_t, bias, *, tm=256, tn=1024,
                 force_two_phase=False):
    """ids: [B, C] int; emb_table: [V, E]; w_t: [E, V] (Linear weight transposed);
    bias: [V].  Returns f32 logits [B, V] == Linear(mean(Embedding(ids), dim=1))."""
    B, C = ids.shape
    V, E = emb_table.shape
    assert w_t.shape == (E, V)
    assert E % 128 == 0, "emb_dim must be a multiple of 128 (lane width)"

    ids_flat = ids.reshape(-1).astype(jnp.int32)
    inv_c = 1.0 / C
    w_itemsize = jnp.dtype(w_t.dtype).itemsize

    def pick_tn(tile_rows):
        # Lane-dense vocab tile (multiple of 128), capped by a VMEM working-set
        # budget (double-buffered weight + f32 out tile) so it fits every gen.
        t = _round_up(min(tn, _round_up(V, 128)), 128)
        while t > 128 and (2 * E * t * w_itemsize + 2 * tile_rows * t * 4) > 20 * 2**20:
            t = _round_up(t // 2, 128)
        return t

    fused_ok = (
        not force_two_phase
        and V * E * 4 <= 4 * 2**20          # f32 table (double-buffered) fits VMEM
        and B <= 256 and B * C <= 4096      # keep the static gather unroll bounded
    )

    # ---------------- fused single-kernel path --------------------------------
    if fused_ok:
        B_pad = _round_up(B, 8)
        TN = pick_tn(B_pad)
        V_pad = _round_up(V, TN)

        emb_f32 = emb_table.astype(jnp.float32)   # exact; avoids packed-bf16 row slices
        bias2d = jnp.asarray(bias, jnp.float32).reshape(1, V)
        w_p = w_t
        if V_pad != V:
            w_p = jnp.pad(w_t, ((0, 0), (0, V_pad - V)))
            bias2d = jnp.pad(bias2d, ((0, 0), (0, V_pad - V)))

        need = (2 * V * E * 4 + 2 * E * TN * w_itemsize
                + 2 * B_pad * TN * 4 + B_pad * E * 4 + 2 * TN * 4)
        cost = pl.CostEstimate(
            flops=2 * B_pad * E * V_pad, transcendentals=0,
            bytes_accessed=(V * E * 4 + E * V_pad * w_itemsize
                            + V_pad * 4 + B_pad * V_pad * 4))

        out = pl.pallas_call(
            functools.partial(fused_cbow_kernel, n_rows=B, c_len=C, inv_c=inv_c),
            out_shape=jax.ShapeDtypeStruct((B_pad, V_pad), jnp.float32),
            grid_spec=pltpu.PrefetchScalarGridSpec(
                num_scalar_prefetch=1,                               # ids -> SMEM
                grid=(V_pad // TN,),
                in_specs=[
                    pl.BlockSpec((V, E), lambda n, ids: (0, 0)),     # resident table
                    pl.BlockSpec((E, TN), lambda n, ids: (0, n)),    # streamed weight
                    pl.BlockSpec((1, TN), lambda n, ids: (0, n)),    # bias tile
                ],
                out_specs=pl.BlockSpec((B_pad, TN), lambda n, ids: (0, n)),
                scratch_shapes=[pltpu.VMEM((B_pad, E), jnp.float32)],
            ),
            compiler_params=pltpu.CompilerParams(
                # means scratch is written at tile 0 and read by later tiles, so
                # the vocab axis must stay on one core.
                dimension_semantics=("arbitrary",),
                vmem_limit_bytes=_vmem_limit(need)),
            cost_estimate=cost,
        )(ids_flat, emb_f32, w_p, bias2d)
        return out[:B, :V]

    # ---------------- general two-phase path -----------------------------------
    TM = tm if B >= tm else _round_up(B, 8)
    B_pad = _round_up(B, TM)
    TN = pick_tn(TM)
    V_pad = _round_up(V, TN)
    TB = 8                                        # batch rows gathered per step

    ids_pad = jnp.zeros((B_pad * C,), jnp.int32).at[: B * C].set(ids_flat)
    bias2d = jnp.asarray(bias, jnp.float32).reshape(1, V)
    w_p = w_t
    if V_pad != V:
        w_p = jnp.pad(w_t, ((0, 0), (0, V_pad - V)))
        bias2d = jnp.pad(bias2d, ((0, 0), (0, V_pad - V)))

    # Phase 1: gather + context mean -> f32 [B_pad, E].
    emb_itemsize = jnp.dtype(emb_table.dtype).itemsize
    p1_need = TB * C * E * emb_itemsize + 2 * TB * E * 4
    means = pl.pallas_call(
        functools.partial(gather_mean_kernel, tb=TB, c_len=C, n_rows=B, inv_c=inv_c),
        out_shape=jax.ShapeDtypeStruct((B_pad, E), jnp.float32),
        grid_spec=pltpu.PrefetchScalarGridSpec(
            num_scalar_prefetch=1,                            # flat ids -> SMEM
            grid=(B_pad // TB,),
            in_specs=[pl.BlockSpec(memory_space=pl.ANY)],     # table stays in HBM
            out_specs=pl.BlockSpec((TB, E), lambda i, ids: (i, 0)),
            scratch_shapes=[
                pltpu.VMEM((TB * C, E), emb_table.dtype),
                pltpu.SemaphoreType.DMA((C,)),
            ]),
        compiler_params=pltpu.CompilerParams(
            dimension_semantics=("parallel",),
            vmem_limit_bytes=_vmem_limit(p1_need)),
    )(ids_pad, emb_table)

    # Phase 2: (B_pad, E) @ (E, V_pad) + bias.  Vocab axis OUTER so each (E, TN)
    # weight block is fetched from HBM once and reused over the batch sweep.
    p2_need = 2 * (TM * E * 4 + E * TN * w_itemsize + TN * 4 + TM * TN * 4)
    cost = pl.CostEstimate(
        flops=2 * B_pad * E * V_pad, transcendentals=0,
        bytes_accessed=(B_pad * E * 4 + E * V_pad * w_itemsize
                        + V_pad * 4 + B_pad * V_pad * 4))
    out = pl.pallas_call(
        matmul_bias_kernel,
        out_shape=jax.ShapeDtypeStruct((B_pad, V_pad), jnp.float32),
        grid_spec=pltpu.PrefetchScalarGridSpec(
            num_scalar_prefetch=0,
            grid=(V_pad // TN, B_pad // TM),                  # (vocab, batch)
            in_specs=[
                pl.BlockSpec((TM, E), lambda n, m: (m, 0)),   # means tile
                pl.BlockSpec((E, TN), lambda n, m: (0, n)),   # weight: constant over m
                pl.BlockSpec((1, TN), lambda n, m: (0, n)),   # bias tile
            ],
            out_specs=pl.BlockSpec((TM, TN), lambda n, m: (m, n)),
        ),
        compiler_params=pltpu.CompilerParams(
            dimension_semantics=("parallel", "parallel"),
            vmem_limit_bytes=_vmem_limit(p2_need)),
        cost_estimate=cost,
    )(means, w_p, bias2d)

    return out[:B, :V]


if __name__ == "__main__":
    key = jax.random.PRNGKey(0)

    def init_params(k, V, E, dtype=jnp.bfloat16):
        k1, k2, k3 = jax.random.split(k, 3)
        emb = jax.random.normal(k1, (V, E), jnp.float32)                  # Embedding ~ N(0,1)
        bound = 1.0 / (E ** 0.5)
        w = jax.random.uniform(k2, (V, E), jnp.float32, -bound, bound)    # Linear weight
        b = jax.random.uniform(k3, (V,), jnp.float32, -bound, bound)      # Linear bias
        return emb.astype(dtype), w.T.astype(dtype), b

    def reference(ids, emb, w_t, b):
        means = emb[ids].astype(jnp.float32).mean(axis=1)
        x = means.astype(w_t.dtype).astype(jnp.float32)                   # matches kernel cast
        return x @ w_t.astype(jnp.float32) + b

    # --- test 1: module-default tiny shapes -> fused single-kernel path -------
    V1, E1, B1, C1 = 16, 256, 2, 8
    k1, k2, key = jax.random.split(key, 3)
    emb1, w_t1, b1 = init_params(k1, V1, E1)
    ids1 = jax.random.randint(k2, (B1, C1), 0, V1, jnp.int32)
    out1 = jax.block_until_ready(cbow_forward(ids1, emb1, w_t1, b1))
    ref1 = reference(ids1, emb1, w_t1, b1)
    assert out1.shape == (B1, V1)
    assert jnp.allclose(out1, ref1, atol=1e-2, rtol=1e-2), "fused path mismatch"

    # --- test 2: larger vocab / ragged sizes -> general two-phase path --------
    V2, E2, B2, C2 = 1000, 256, 10, 6
    k3, k4, _ = jax.random.split(key, 3)
    emb2, w_t2, b2 = init_params(k3, V2, E2)
    ids2 = jax.random.randint(k4, (B2, C2), 0, V2, jnp.int32)
    out2 = jax.block_until_ready(
        cbow_forward(ids2, emb2, w_t2, b2, force_two_phase=True))
    ref2 = reference(ids2, emb2, w_t2, b2)
    assert out2.shape == (B2, V2)
    assert jnp.allclose(out2, ref2, atol=1e-2, rtol=1e-2), "two-phase path mismatch"

    print("KERNEL_OK")
</pallas_src>

<mosaic_0001>
module attributes {stable_mosaic.version = 11 : i64} {
  func.func @fused_cbow_kernel(%arg0: i32, %arg1: memref<16xi32, #tpu.memory_space<smem>>, %arg2: memref<16x256xf32, #tpu.memory_space<vmem>>, %arg3: memref<256x128xbf16, #tpu.memory_space<vmem>>, %arg4: memref<1x128xf32, #tpu.memory_space<vmem>>, %arg5: memref<8x128xf32, #tpu.memory_space<vmem>>, %arg6: memref<8x256xf32, #tpu.memory_space<vmem>>) attributes {dimension_semantics = [#tpu.dimension_semantics<arbitrary>], iteration_bounds = array<i64: 1>, scalar_prefetch = 1 : i64, scratch_operands = 1 : i64, tpu.core_type = #tpu.core_type<tc>, window_params = [{pipeline_mode = #tpu.pipeline_mode<synchronous>, transform_indices = @transform_0, window_bounds = array<i64: 16, 256>}, {transform_indices = @transform_1, window_bounds = array<i64: 256, 128>}, {transform_indices = @transform_2, window_bounds = array<i64: 1, 128>}, {transform_indices = @transform_3, window_bounds = array<i64: 8, 128>}]} {
    %c0_i32 = arith.constant 0 : i32
    %0 = arith.cmpi eq, %arg0, %c0_i32 : i32
    %1 = arith.extui %0 : i1 to i32
    %c0_i32_0 = arith.constant 0 : i32
    %2 = arith.cmpi ne, %1, %c0_i32_0 : i32
    scf.if %2 {
      %cst_8 = arith.constant 0.000000e+00 : f32
      %11 = vector.broadcast %cst_8 : f32 to vector<8x256xf32>
      %c0_9 = arith.constant 0 : index
      %c0_10 = arith.constant 0 : index
      %12 = vector.load %arg6[%c0_9, %c0_10] : memref<8x256xf32, #tpu.memory_space<vmem>>, vector<8x256xf32>
      tpu.vector_store %arg6[%c0_9, %c0_10], %11 {strides = array<i32>} : memref<8x256xf32, #tpu.memory_space<vmem>>, vector<8x256xf32>,
      %c0_11 = arith.constant 0 : index
      %13 = memref.load %arg1[%c0_11] : memref<16xi32, #tpu.memory_space<smem>>
      %14 = arith.index_cast %13 : i32 to index
      %c0_12 = arith.constant 0 : index
      %15 = vector.load %arg2[%14, %c0_12] : memref<16x256xf32, #tpu.memory_space<vmem>>, vector<1x256xf32>
      %c1 = arith.constant 1 : index
      %16 = memref.load %arg1[%c1] : memref<16xi32, #tpu.memory_space<smem>>
      %17 = arith.index_cast %16 : i32 to index
      %c0_13 = arith.constant 0 : index
      %18 = vector.load %arg2[%17, %c0_13] : memref<16x256xf32, #tpu.memory_space<vmem>>, vector<1x256xf32>
      %19 = arith.addf %15, %18 : vector<1x256xf32>
      %c2 = arith.constant 2 : index
      %20 = memref.load %arg1[%c2] : memref<16xi32, #tpu.memory_space<smem>>
      %21 = arith.index_cast %20 : i32 to index
      %c0_14 = arith.constant 0 : index
      %22 = vector.load %arg2[%21, %c0_14] : memref<16x256xf32, #tpu.memory_space<vmem>>, vector<1x256xf32>
      %23 = arith.addf %19, %22 : vector<1x256xf32>
      %c3 = arith.constant 3 : index
      %24 = memref.load %arg1[%c3] : memref<16xi32, #tpu.memory_space<smem>>
      %25 = arith.index_cast %24 : i32 to index
      %c0_15 = arith.constant 0 : index
      %26 = vector.load %arg2[%25, %c0_15] : memref<16x256xf32, #tpu.memory_space<vmem>>, vector<1x256xf32>
      %27 = arith.addf %23, %26 : vector<1x256xf32>
      %c4 = arith.constant 4 : index
      %28 = memref.load %arg1[%c4] : memref<16xi32, #tpu.memory_space<smem>>
      %29 = arith.index_cast %28 : i32 to index
      %c0_16 = arith.constant 0 : index
      %30 = vector.load %arg2[%29, %c0_16] : memref<16x256xf32, #tpu.memory_space<vmem>>, vector<1x256xf32>
      %31 = arith.addf %27, %30 : vector<1x256xf32>
      %c5 = arith.constant 5 : index
      %32 = memref.load %arg1[%c5] : memref<16xi32, #tpu.memory_space<smem>>
      %33 = arith.index_cast %32 : i32 to index
      %c0_17 = arith.constant 0 : index
      %34 = vector.load %arg2[%33, %c0_17] : memref<16x256xf32, #tpu.memory_space<vmem>>, vector<1x256xf32>
      %35 = arith.addf %31, %34 : vector<1x256xf32>
      %c6 = arith.constant 6 : index
      %36 = memref.load %arg1[%c6] : memref<16xi32, #tpu.memory_space<smem>>
      %37 = arith.index_cast %36 : i32 to index
      %c0_18 = arith.constant 0 : index
      %38 = vector.load %arg2[%37, %c0_18] : memref<16x256xf32, #tpu.memory_space<vmem>>, vector<1x256xf32>
      %39 = arith.addf %35, %38 : vector<1x256xf32>
      %c7 = arith.constant 7 : index
      %40 = memref.load %arg1[%c7] : memref<16xi32, #tpu.memory_space<smem>>
      %41 = arith.index_cast %40 : i32 to index
      %c0_19 = arith.constant 0 : index
      %42 = vector.load %arg2[%41, %c0_19] : memref<16x256xf32, #tpu.memory_space<vmem>>, vector<1x256xf32>
      %43 = arith.addf %39, %42 : vector<1x256xf32>
      %cst_20 = arith.constant 1.250000e-01 : f32
      %44 = vector.broadcast %cst_20 : f32 to vector<1x256xf32>
      %45 = arith.mulf %43, %44 : vector<1x256xf32>
      %c0_21 = arith.constant 0 : index
      %c0_22 = arith.constant 0 : index
      %46 = vector.load %arg6[%c0_21, %c0_22] : memref<8x256xf32, #tpu.memory_space<vmem>>, vector<1x256xf32>
      tpu.vector_store %arg6[%c0_21, %c0_22], %45 {strides = array<i32>} : memref<8x256xf32, #tpu.memory_space<vmem>>, vector<1x256xf32>,
      %c8 = arith.constant 8 : index
      %47 = memref.load %arg1[%c8] : memref<16xi32, #tpu.memory_space<smem>>
      %48 = arith.index_cast %47 : i32 to index
      %c0_23 = arith.constant 0 : index
      %49 = vector.load %arg2[%48, %c0_23] : memref<16x256xf32, #tpu.memory_space<vmem>>, vector<1x256xf32>
      %c9 = arith.constant 9 : index
      %50 = memref.load %arg1[%c9] : memref<16xi32, #tpu.memory_space<smem>>
      %51 = arith.index_cast %50 : i32 to index
      %c0_24 = arith.constant 0 : index
      %52 = vector.load %arg2[%51, %c0_24] : memref<16x256xf32, #tpu.memory_space<vmem>>, vector<1x256xf32>
      %53 = arith.addf %49, %52 : vector<1x256xf32>
      %c10 = arith.constant 10 : index
      %54 = memref.load %arg1[%c10] : memref<16xi32, #tpu.memory_space<smem>>
      %55 = arith.index_cast %54 : i32 to index
      %c0_25 = arith.constant 0 : index
      %56 = vector.load %arg2[%55, %c0_25] : memref<16x256xf32, #tpu.memory_space<vmem>>, vector<1x256xf32>
      %57 = arith.addf %53, %56 : vector<1x256xf32>
      %c11 = arith.constant 11 : index
      %58 = memref.load %arg1[%c11] : memref<16xi32, #tpu.memory_space<smem>>
      %59 = arith.index_cast %58 : i32 to index
      %c0_26 = arith.constant 0 : index
      %60 = vector.load %arg2[%59, %c0_26] : memref<16x256xf32, #tpu.memory_space<vmem>>, vector<1x256xf32>
      %61 = arith.addf %57, %60 : vector<1x256xf32>
      %c12 = arith.constant 12 : index
      %62 = memref.load %arg1[%c12] : memref<16xi32, #tpu.memory_space<smem>>
      %63 = arith.index_cast %62 : i32 to index
      %c0_27 = arith.constant 0 : index
      %64 = vector.load %arg2[%63, %c0_27] : memref<16x256xf32, #tpu.memory_space<vmem>>, vector<1x256xf32>
      %65 = arith.addf %61, %64 : vector<1x256xf32>
      %c13 = arith.constant 13 : index
      %66 = memref.load %arg1[%c13] : memref<16xi32, #tpu.memory_space<smem>>
      %67 = arith.index_cast %66 : i32 to index
      %c0_28 = arith.constant 0 : index
      %68 = vector.load %arg2[%67, %c0_28] : memref<16x256xf32, #tpu.memory_space<vmem>>, vector<1x256xf32>
      %69 = arith.addf %65, %68 : vector<1x256xf32>
      %c14 = arith.constant 14 : index
      %70 = memref.load %arg1[%c14] : memref<16xi32, #tpu.memory_space<smem>>
      %71 = arith.index_cast %70 : i32 to index
      %c0_29 = arith.constant 0 : index
      %72 = vector.load %arg2[%71, %c0_29] : memref<16x256xf32, #tpu.memory_space<vmem>>, vector<1x256xf32>
      %73 = arith.addf %69, %72 : vector<1x256xf32>
      %c15 = arith.constant 15 : index
      %74 = memref.load %arg1[%c15] : memref<16xi32, #tpu.memory_space<smem>>
      %75 = arith.index_cast %74 : i32 to index
      %c0_30 = arith.constant 0 : index
      %76 = vector.load %arg2[%75, %c0_30] : memref<16x256xf32, #tpu.memory_space<vmem>>, vector<1x256xf32>
      %77 = arith.addf %73, %76 : vector<1x256xf32>
      %cst_31 = arith.constant 1.250000e-01 : f32
      %78 = vector.broadcast %cst_31 : f32 to vector<1x256xf32>
      %79 = arith.mulf %77, %78 : vector<1x256xf32>
      %c1_32 = arith.constant 1 : index
      %c0_33 = arith.constant 0 : index
      %80 = vector.load %arg6[%c1_32, %c0_33] : memref<8x256xf32, #tpu.memory_space<vmem>>, vector<1x256xf32>
      tpu.vector_store %arg6[%c1_32, %c0_33], %79 {strides = array<i32>} : memref<8x256xf32, #tpu.memory_space<vmem>>, vector<1x256xf32>,
    } else {
    }
    %c0 = arith.constant 0 : index
    %c0_1 = arith.constant 0 : index
    %3 = vector.load %arg6[%c0, %c0_1] : memref<8x256xf32, #tpu.memory_space<vmem>>, vector<8x256xf32>
    %4 = arith.truncf %3 : vector<8x256xf32> to vector<8x256xbf16>
    %c0_2 = arith.constant 0 : index
    %c0_3 = arith.constant 0 : index
    %5 = vector.load %arg3[%c0_2, %c0_3] : memref<256x128xbf16, #tpu.memory_space<vmem>>, vector<256x128xbf16>
    %cst = arith.constant dense<0.000000e+00> : vector<8x128xf32>
    %6 = tpu.matmul %4, %5, %cst {dimension_numbers = #tpu.dot_dimension_numbers<[1], [0], [0], [1], [0, 0, 1, 1], [], []>} : vector<8x256xbf16>, vector<256x128xbf16>, vector<8x128xf32> -> vector<8x128xf32>
    %c0_4 = arith.constant 0 : index
    %c0_5 = arith.constant 0 : index
    %7 = vector.load %arg4[%c0_4, %c0_5] : memref<1x128xf32, #tpu.memory_space<vmem>>, vector<1x128xf32>
    %8 = vector.broadcast %7 : vector<1x128xf32> to vector<8x128xf32>
    %9 = arith.addf %6, %8 : vector<8x128xf32>
    %c0_6 = arith.constant 0 : index
    %c0_7 = arith.constant 0 : index
    %10 = vector.load %arg5[%c0_6, %c0_7] : memref<8x128xf32, #tpu.memory_space<vmem>>, vector<8x128xf32>
    tpu.vector_store %arg5[%c0_6, %c0_7], %9 {strides = array<i32>} : memref<8x128xf32, #tpu.memory_space<vmem>>, vector<8x128xf32>,
    return
  }
  func.func @transform_0(%arg0: i32, %arg1: memref<16xi32, #tpu.memory_space<smem>>) -> (i32, i32) {
    %c0_i32 = arith.constant 0 : i32
    %c0_i32_0 = arith.constant 0 : i32
    %c0_i32_1 = arith.constant 0 : i32
    return %c0_i32, %c0_i32_0 : i32, i32
  }
  func.func @transform_1(%arg0: i32, %arg1: memref<16xi32, #tpu.memory_space<smem>>) -> (i32, i32) {
    %c0_i32 = arith.constant 0 : i32
    %c0_i32_0 = arith.constant 0 : i32
    return %c0_i32, %arg0 : i32, i32
  }
  func.func @transform_2(%arg0: i32, %arg1: memref<16xi32, #tpu.memory_space<smem>>) -> (i32, i32) {
    %c0_i32 = arith.constant 0 : i32
    %c0_i32_0 = arith.constant 0 : i32
    return %c0_i32, %arg0 : i32, i32
  }
  func.func @transform_3(%arg0: i32, %arg1: memref<16xi32, #tpu.memory_space<smem>>) -> (i32, i32) {
    %c0_i32 = arith.constant 0 : i32
    %c0_i32_0 = arith.constant 0 : i32
    return %c0_i32, %arg0 : i32, i32
  }
}

</mosaic_0001>

<llo_original>
// kernel: tpu_custom_call.1
$region0: #{tpu_custom_call.1}
  #allocation0 [shape = 'u32[]', space=smem, size = 0x4, offset = 0x4, fixed_abs, tag = 'smem constant byte address 0x4 - core index']
  #allocation1 [shape = 'u32[144,128]{1,0:T(1,128)}', space=vmem, size = 0x12000, scoped, tag = 'internal scratch']
  #allocation2 [shape = 'f32[8,256]{1,0:T(8,128)}', space=vmem, size = 0x2000, scoped, tag = 'scratch operand']
  #allocation3 [shape = 's32[1]{0}', space=sflag, size = 0x4, scoped, tag = 'scoped memory for tpu_custom_call.1']
  #allocation4 [shape = 'u8[512]{0}', space=smem, size = 0x200, scoped, tag = 'prefetched SMEM operand 0']
  %s0 = inlined_call_operand.hbm [shape: s32[16], index: 0, kind: input, shape index: {}]
  %s1 = inlined_call_operand.hbm [shape: f32[16,256], index: 1, kind: input, shape index: {}]
  %s2 = inlined_call_operand.hbm [shape: bf16[256,128], index: 2, kind: input, shape index: {}]
  %s3 = inlined_call_operand.vmem [shape: f32[1,128], index: 3, kind: input, shape index: {}]
  %s4 = inlined_call_operand.hbm [shape: f32[8,128], index: 4, kind: output, shape index: {}]
  %s5 = sld [smem:[#allocation0]]
  $region34: #{tpu_custom_call.1} parent=0
    _
  %s7 = ssub.s32 1, %s5
  %s8 = scalar_select 0, %s7, %s5
  %10 = dma.hbm_to_smem %s0, 16, [#allocation4], [#allocation3]
  %11 = dma.done [#allocation3], 16
  %12 = sfence
  $region1: #{tpu_custom_call.1} parent=0
    #allocation5 [shape = 'u8[16384]{0}', space=vmem, size = 0x4000, scoped, tag = 'input window, operand 1, single buffered']
    #allocation6 [shape = 's32[1]{0}', space=sflag, size = 0x4, scoped, tag = 'scoped memory for tpu_custom_call.1']
    #allocation7 [shape = 's32[1]{0}', space=sflag, size = 0x4, scoped, tag = 'scoped memory for tpu_custom_call.1']
    #allocation8 [shape = 'u8[65536]{0}', space=vmem, size = 0x10000, scoped, tag = 'input window, operand 2, single buffered']
    #allocation9 [shape = 's32[1]{0}', space=sflag, size = 0x4, scoped, tag = 'scoped memory for tpu_custom_call.1']
    #allocation10 [shape = 'u8[4096]{0}', space=vmem, size = 0x1000, scoped, tag = 'output window, operand 0, single buffered']
    %13 = vsyncpa [#allocation6], 0
    %14 = vsyncpa [#allocation9], 0
    %15 = vsyncpa [#allocation7], 0
    // Predicated region
    $region2: #{tpu_custom_call.1} parent=1 // pred_check
      _
    $region3: #{tpu_custom_call.1} parent=1 // pred_check_branch
      %17 = sbr.rel (0) target = $region5
    $region4: #{tpu_custom_call.1} parent=1 // pred_region
      %s19 = ssub.s32 512, 512
      %20 = vsyncadd [#allocation6], %s19
      %s21 = sshll.u32 [#allocation5], 4
      %s22 = int_to_ptr.vmem [resolvable:$true] %s21
      %27 = dma.hbm_to_vmem [thread:$0]  %s1, 512, %s22, [#allocation6], 256, 256, 16
    $region5: #{tpu_custom_call.1} parent=1 // pred_fallthru
      _
    // Predicated region
    $region6: #{tpu_custom_call.1} parent=1 // pred_check
      _
    $region7: #{tpu_custom_call.1} parent=1 // pred_check_branch
      %29 = sbr.rel (0) target = $region9
    $region8: #{tpu_custom_call.1} parent=1 // pred_region
      %s31 = ssub.s32 2048, 2048
      %32 = vsyncadd [#allocation9], %s31
      %s33 = sshll.u32 [#allocation8], 4
      %s34 = int_to_ptr.vmem [resolvable:$true] %s33
      %39 = dma.hbm_to_vmem [thread:$0]  %s2, 2048, %s34, [#allocation9], 64, 64, 4
    $region9: #{tpu_custom_call.1} parent=1 // pred_fallthru
      _
    // Predicated region
    $region10: #{tpu_custom_call.1} parent=1 // pred_check
      _
    $region11: #{tpu_custom_call.1} parent=1 // pred_check_branch
      %41 = sbr.rel (0) target = $region13
    $region12: #{tpu_custom_call.1} parent=1 // pred_region
      _
    $region13: #{tpu_custom_call.1} parent=1 // pred_fallthru
      _
    // Predicated region
    $region14: #{tpu_custom_call.1} parent=1 // pred_check
      _
    $region15: #{tpu_custom_call.1} parent=1 // pred_check_branch
      %43 = sbr.rel (0) target = $region17
    $region16: #{tpu_custom_call.1} parent=1 // pred_region
      %44 = dma.done [#allocation6], 512
    $region17: #{tpu_custom_call.1} parent=1 // pred_fallthru
      _
    // Predicated region
    $region18: #{tpu_custom_call.1} parent=1 // pred_check
      _
    $region19: #{tpu_custom_call.1} parent=1 // pred_check_branch
      %46 = sbr.rel (0) target = $region21
    $region20: #{tpu_custom_call.1} parent=1 // pred_region
      %47 = dma.done [#allocation9], 2048
    $region21: #{tpu_custom_call.1} parent=1 // pred_fallthru
      _
    %p49 = scmp.eq.s32.totalorder 0, 0
    // Predicated region
    $region22: #{tpu_custom_call.1} parent=1 // pred_check
      %p50 = pneg %p49
    $region23: #{tpu_custom_call.1} parent=1 // pred_check_branch
      %52 = sbr.rel (%p50) target = $region25
    $region24: #{tpu_custom_call.1} parent=1 // pred_region
      %53 = vst [vmem:[#allocation2] sm:$0xff] 0.0
      %54 = vst [vmem:[#allocation2 + $0x8] sm:$0xff] 0.0
      %s55 = sld [smem:[#allocation4]]
      %s56 = sshra.s32 %s55, 3
      %s57 = sand.u32 %s55, 7
      %s58 = sshra.s32 %s55, 3
      %s59 = sand.u32 %s55, 7
      %s60 = smul.u32 %s56, 2
      %s61 = smul.u32 %s60, 8
      %s62 = sadd.s32 %s61, %s59
      %s63 = scalar_lea.vmem [#allocation5], %s62
      %v64 = vld [vmem:[%s63] ss:$8 sm:$0x3]
      %s65 = sld [smem:[#allocation4 + $0x1]]
      %s66 = sshra.s32 %s65, 3
      %s67 = sand.u32 %s65, 7
      %s68 = sshra.s32 %s65, 3
      %s69 = sand.u32 %s65, 7
      %s70 = smul.u32 %s66, 2
      %s71 = smul.u32 %s70, 8
      %s72 = sadd.s32 %s71, %s69
      %s73 = scalar_lea.vmem [#allocation5], %s72
      %v74 = vld [vmem:[%s73] ss:$8 sm:$0x3]
      %v75 = vadd.f32 %v64, %v74
      %s76 = sld [smem:[#allocation4 + $0x2]]
      %s77 = sshra.s32 %s76, 3
      %s78 = sand.u32 %s76, 7
      %s79 = sshra.s32 %s76, 3
      %s80 = sand.u32 %s76, 7
      %s81 = smul.u32 %s77, 2
      %s82 = smul.u32 %s81, 8
      %s83 = sadd.s32 %s82, %s80
      %s84 = scalar_lea.vmem [#allocation5], %s83
      %v85 = vld [vmem:[%s84] ss:$8 sm:$0x3]
      %v86 = vadd.f32 %v75, %v85
      %s87 = sld [smem:[#allocation4 + $0x3]]
      %s88 = sshra.s32 %s87, 3
      %s89 = sand.u32 %s87, 7
      %s90 = sshra.s32 %s87, 3
      %s91 = sand.u32 %s87, 7
      %s92 = smul.u32 %s88, 2
      %s93 = smul.u32 %s92, 8
      %s94 = sadd.s32 %s93, %s91
      %s95 = scalar_lea.vmem [#allocation5], %s94
      %v96 = vld [vmem:[%s95] ss:$8 sm:$0x3]
      %v97 = vadd.f32 %v86, %v96
      %s98 = sld [smem:[#allocation4 + $0x4]]
      %s99 = sshra.s32 %s98, 3
      %s100 = sand.u32 %s98, 7
      %s101 = sshra.s32 %s98, 3
      %s102 = sand.u32 %s98, 7
      %s103 = smul.u32 %s99, 2
      %s104 = smul.u32 %s103, 8
      %s105 = sadd.s32 %s104, %s102
      %s106 = scalar_lea.vmem [#allocation5], %s105
      %v107 = vld [vmem:[%s106] ss:$8 sm:$0x3]
      %v108 = vadd.f32 %v97, %v107
      %s109 = sld [smem:[#allocation4 + $0x5]]
      %s110 = sshra.s32 %s109, 3
      %s111 = sand.u32 %s109, 7
      %s112 = sshra.s32 %s109, 3
      %s113 = sand.u32 %s109, 7
      %s114 = smul.u32 %s110, 2
      %s115 = smul.u32 %s114, 8
      %s116 = sadd.s32 %s115, %s113
      %s117 = scalar_lea.vmem [#allocation5], %s116
      %v118 = vld [vmem:[%s117] ss:$8 sm:$0x3]
      %v119 = vadd.f32 %v108, %v118
      %s120 = sld [smem:[#allocation4 + $0x6]]
      %s121 = sshra.s32 %s120, 3
      %s122 = sand.u32 %s120, 7
      %s123 = sshra.s32 %s120, 3
      %s124 = sand.u32 %s120, 7
      %s125 = smul.u32 %s121, 2
      %s126 = smul.u32 %s125, 8
      %s127 = sadd.s32 %s126, %s124
      %s128 = scalar_lea.vmem [#allocation5], %s127
      %v129 = vld [vmem:[%s128] ss:$8 sm:$0x3]
      %v130 = vadd.f32 %v119, %v129
      %s131 = sld [smem:[#allocation4 + $0x7]]
      %s132 = sshra.s32 %s131, 3
      %s133 = sand.u32 %s131, 7
      %s134 = sshra.s32 %s131, 3
      %s135 = sand.u32 %s131, 7
      %s136 = smul.u32 %s132, 2
      %s137 = smul.u32 %s136, 8
      %s138 = sadd.s32 %s137, %s135
      %s139 = scalar_lea.vmem [#allocation5], %s138
      %v140 = vld [vmem:[%s139] ss:$8 sm:$0x3]
      %v141 = vadd.f32 %v130, %v140
      %v142 = vmul.f32 %v141, 0.125
      %v143 = vlaneseq
      %vm144 = vcmp.ge.s32.totalorder %v143, 0
      %vm145 = vcmp.lt.s32.totalorder %v143, 256
      %vm146 = vmand %vm144, %vm145
      %147 = vst.msk [vmem:[#allocation2] ss:$8 sm:$0x3] %vm146, %v142
      %148 = vst.msk [vmem:[#allocation2] ss:$8 sm:$0x0] %vm146, %v142
      %s149 = sld [smem:[#allocation4 + $0x8]]
      %s150 = sshra.s32 %s149, 3
      %s151 = sand.u32 %s149, 7
      %s152 = sshra.s32 %s149, 3
      %s153 = sand.u32 %s149, 7
      %s154 = smul.u32 %s150, 2
      %s155 = smul.u32 %s154, 8
      %s156 = sadd.s32 %s155, %s153
      %s157 = scalar_lea.vmem [#allocation5], %s156
      %v158 = vld [vmem:[%s157] ss:$8 sm:$0x3]
      %s159 = sld [smem:[#allocation4 + $0x9]]
      %s160 = sshra.s32 %s159, 3
      %s161 = sand.u32 %s159, 7
      %s162 = sshra.s32 %s159, 3
      %s163 = sand.u32 %s159, 7
      %s164 = smul.u32 %s160, 2
      %s165 = smul.u32 %s164, 8
      %s166 = sadd.s32 %s165, %s163
      %s167 = scalar_lea.vmem [#allocation5], %s166
      %v168 = vld [vmem:[%s167] ss:$8 sm:$0x3]
      %v169 = vadd.f32 %v158, %v168
      %s170 = sld [smem:[#allocation4 + $0xa]]
      %s171 = sshra.s32 %s170, 3
      %s172 = sand.u32 %s170, 7
      %s173 = sshra.s32 %s170, 3
      %s174 = sand.u32 %s170, 7
      %s175 = smul.u32 %s171, 2
      %s176 = smul.u32 %s175, 8
      %s177 = sadd.s32 %s176, %s174
      %s178 = scalar_lea.vmem [#allocation5], %s177
      %v179 = vld [vmem:[%s178] ss:$8 sm:$0x3]
      %v180 = vadd.f32 %v169, %v179
      %s181 = sld [smem:[#allocation4 + $0xb]]
      %s182 = sshra.s32 %s181, 3
      %s183 = sand.u32 %s181, 7
      %s184 = sshra.s32 %s181, 3
      %s185 = sand.u32 %s181, 7
      %s186 = smul.u32 %s182, 2
      %s187 = smul.u32 %s186, 8
      %s188 = sadd.s32 %s187, %s185
      %s189 = scalar_lea.vmem [#allocation5], %s188
      %v190 = vld [vmem:[%s189] ss:$8 sm:$0x3]
      %v191 = vadd.f32 %v180, %v190
      %s192 = sld [smem:[#allocation4 + $0xc]]
      %s193 = sshra.s32 %s192, 3
      %s194 = sand.u32 %s192, 7
      %s195 = sshra.s32 %s192, 3
      %s196 = sand.u32 %s192, 7
      %s197 = smul.u32 %s193, 2
      %s198 = smul.u32 %s197, 8
      %s199 = sadd.s32 %s198, %s196
      %s200 = scalar_lea.vmem [#allocation5], %s199
      %v201 = vld [vmem:[%s200] ss:$8 sm:$0x3]
      %v202 = vadd.f32 %v191, %v201
      %s203 = sld [smem:[#allocation4 + $0xd]]
      %s204 = sshra.s32 %s203, 3
      %s205 = sand.u32 %s203, 7
      %s206 = sshra.s32 %s203, 3
      %s207 = sand.u32 %s203, 7
      %s208 = smul.u32 %s204, 2
      %s209 = smul.u32 %s208, 8
      %s210 = sadd.s32 %s209, %s207
      %s211 = scalar_lea.vmem [#allocation5], %s210
      %v212 = vld [vmem:[%s211] ss:$8 sm:$0x3]
      %v213 = vadd.f32 %v202, %v212
      %s214 = sld [smem:[#allocation4 + $0xe]]
      %s215 = sshra.s32 %s214, 3
      %s216 = sand.u32 %s214, 7
      %s217 = sshra.s32 %s214, 3
      %s218 = sand.u32 %s214, 7
      %s219 = smul.u32 %s215, 2
      %s220 = smul.u32 %s219, 8
      %s221 = sadd.s32 %s220, %s218
      %s222 = scalar_lea.vmem [#allocation5], %s221
      %v223 = vld [vmem:[%s222] ss:$8 sm:$0x3]
      %v224 = vadd.f32 %v213, %v223
      %s225 = sld [smem:[#allocation4 + $0xf]]
      %s226 = sshra.s32 %s225, 3
      %s227 = sand.u32 %s225, 7
      %s228 = sshra.s32 %s225, 3
      %s229 = sand.u32 %s225, 7
      %s230 = smul.u32 %s226, 2
      %s231 = smul.u32 %s230, 8
      %s232 = sadd.s32 %s231, %s229
      %s233 = scalar_lea.vmem [#allocation5], %s232
      %v234 = vld [vmem:[%s233] ss:$8 sm:$0x3]
      %v235 = vadd.f32 %v224, %v234
      %v236 = vmul.f32 %v235, 0.125
      %s237 = scalar_lea.vmem [#allocation2], 1
      %238 = vst.msk [vmem:[%s237] ss:$8 sm:$0x3] %vm146, %v236
      %239 = vst.msk [vmem:[%s237] ss:$8 sm:$0x0] %vm146, %v236
    $region25: #{tpu_custom_call.1} parent=1 // pred_fallthru
      _
    %v240 = vld [vmem:[#allocation2] sm:$0xff]
    %v241 = vld [vmem:[#allocation2 + $0x8] sm:$0xff]
    %v242 = vpack.c.bf16 %v240, %v240
    %v243 = vpack.c.bf16 %v241, %v241
    %v244 = vld [vmem:[#allocation8] sm:$0xf]
    %v245 = vld [vmem:[#allocation8 + $0x4] sm:$0xf]
    %v246 = vld [vmem:[#allocation8 + $0x8] sm:$0xf]
    %v247 = vld [vmem:[#allocation8 + $0xc] sm:$0xf]
    %v248 = vld [vmem:[#allocation8 + $0x10] sm:$0xf]
    %v249 = vld [vmem:[#allocation8 + $0x14] sm:$0xf]
    %v250 = vld [vmem:[#allocation8 + $0x18] sm:$0xf]
    %v251 = vld [vmem:[#allocation8 + $0x1c] sm:$0xf]
    %v252 = vld [vmem:[#allocation8 + $0x20] sm:$0xf]
    %v253 = vld [vmem:[#allocation8 + $0x24] sm:$0xf]
    %v254 = vld [vmem:[#allocation8 + $0x28] sm:$0xf]
    %v255 = vld [vmem:[#allocation8 + $0x2c] sm:$0xf]
    %v256 = vld [vmem:[#allocation8 + $0x30] sm:$0xf]
    %v257 = vld [vmem:[#allocation8 + $0x34] sm:$0xf]
    %v258 = vld [vmem:[#allocation8 + $0x38] sm:$0xf]
    %v259 = vld [vmem:[#allocation8 + $0x3c] sm:$0xf]
    %v260 = vld [vmem:[#allocation8 + $0x40] sm:$0xf]
    %v261 = vld [vmem:[#allocation8 + $0x44] sm:$0xf]
    %v262 = vld [vmem:[#allocation8 + $0x48] sm:$0xf]
    %v263 = vld [vmem:[#allocation8 + $0x4c] sm:$0xf]
    %v264 = vld [vmem:[#allocation8 + $0x50] sm:$0xf]
    %v265 = vld [vmem:[#allocation8 + $0x54] sm:$0xf]
    %v266 = vld [vmem:[#allocation8 + $0x58] sm:$0xf]
    %v267 = vld [vmem:[#allocation8 + $0x5c] sm:$0xf]
    %v268 = vld [vmem:[#allocation8 + $0x60] sm:$0xf]
    %v269 = vld [vmem:[#allocation8 + $0x64] sm:$0xf]
    %v270 = vld [vmem:[#allocation8 + $0x68] sm:$0xf]
    %v271 = vld [vmem:[#allocation8 + $0x6c] sm:$0xf]
    %v272 = vld [vmem:[#allocation8 + $0x70] sm:$0xf]
    %v273 = vld [vmem:[#allocation8 + $0x74] sm:$0xf]
    %v274 = vld [vmem:[#allocation8 + $0x78] sm:$0xf]
    %v275 = vld [vmem:[#allocation8 + $0x7c] sm:$0xf]
    %v276 = vld [vmem:[%s3] sm:$0x1]
    %v278 = vlaneseq
    %v279 = vshrl.u32 %v278, 7
    %v280 = vsub.s32 0, %v279
    %v281 = vrot.slane %v276, %v280
    %v315 = vunpack.c.l.b16 %v244
    %v316 = vunpack.c.l.b16 %v245
    %v317 = vunpack.c.l.b16 %v246
    %v318 = vunpack.c.l.b16 %v247
    %v319 = vunpack.c.l.b16 %v248
    %v320 = vunpack.c.l.b16 %v249
    %v321 = vunpack.c.l.b16 %v250
    %v322 = vunpack.c.l.b16 %v251
    %v323 = vunpack.c.l.b16 %v252
    %v324 = vunpack.c.l.b16 %v253
    %v325 = vunpack.c.l.b16 %v254
    %v326 = vunpack.c.l.b16 %v255
    %v327 = vunpack.c.l.b16 %v256
    %v328 = vunpack.c.l.b16 %v257
    %v329 = vunpack.c.l.b16 %v258
    %v330 = vunpack.c.l.b16 %v259
    %v331 = vunpack.c.l.b16 %v260
    %v332 = vunpack.c.l.b16 %v261
    %v333 = vunpack.c.l.b16 %v262
    %v334 = vunpack.c.l.b16 %v263
    %v335 = vunpack.c.l.b16 %v264
    %v336 = vunpack.c.l.b16 %v265
    %v337 = vunpack.c.l.b16 %v266
    %v338 = vunpack.c.l.b16 %v267
    %v339 = vunpack.c.l.b16 %v268
    %v340 = vunpack.c.l.b16 %v269
    %v341 = vunpack.c.l.b16 %v270
    %v342 = vunpack.c.l.b16 %v271
    %v343 = vunpack.c.l.b16 %v272
    %v344 = vunpack.c.l.b16 %v273
    %v345 = vunpack.c.l.b16 %v274
    %v346 = vunpack.c.l.b16 %v275
    %v347 = vpack.c.b16 %v316, %v315
    %v348 = vpack.c.b16 %v318, %v317
    %v349 = vpack.c.b16 %v320, %v319
    %v350 = vpack.c.b16 %v322, %v321
    %v351 = vpack.c.b16 %v324, %v323
    %v352 = vpack.c.b16 %v326, %v325
    %v353 = vpack.c.b16 %v328, %v327
    %v354 = vpack.c.b16 %v330, %v329
    %v355 = vpack.c.b16 %v332, %v331
    %v356 = vpack.c.b16 %v334, %v333
    %v357 = vpack.c.b16 %v336, %v335
    %v358 = vpack.c.b16 %v338, %v337
    %v359 = vpack.c.b16 %v340, %v339
    %v360 = vpack.c.b16 %v342, %v341
    %v361 = vpack.c.b16 %v344, %v343
    %v362 = vpack.c.b16 %v346, %v345
    %379 = vmatprep.subr.bf16.mxu0 0
    %380 = vmatpush1.bf16.msra.mxu0 %v354
    %381 = vmatprep.subr.bf16.mxu0 0
    %382 = vmatpush1.bf16.msra.mxu0 %v353
    %383 = vmatprep.subr.bf16.mxu0 0
    %384 = vmatpush1.bf16.msra.mxu0 %v352
    %385 = vmatprep.subr.bf16.mxu0 0
    %386 = vmatpush1.bf16.msra.mxu0 %v351
    %387 = vmatprep.subr.bf16.mxu0 0
    %388 = vmatpush1.bf16.msra.mxu0 %v350
    %389 = vmatprep.subr.bf16.mxu0 0
    %390 = vmatpush1.bf16.msra.mxu0 %v349
    %391 = vmatprep.subr.bf16.mxu0 0
    %392 = vmatpush1.bf16.msra.mxu0 %v348
    %393 = vmatprep.subr.bf16.mxu0 0
    %394 = vmatpush1.bf16.msra.mxu0 %v347
    %395 = vmatprep.subr.bf16.mxu0 0
    %396 = vmatpush2.bf16.msra.mxu0 %v362
    %397 = vmatprep.subr.bf16.mxu0 0
    %398 = vmatpush2.bf16.msra.mxu0 %v361
    %399 = vmatprep.subr.bf16.mxu0 0
    %400 = vmatpush2.bf16.msra.mxu0 %v360
    %401 = vmatprep.subr.bf16.mxu0 0
    %402 = vmatpush2.bf16.msra.mxu0 %v359
    %403 = vmatprep.subr.bf16.mxu0 0
    %404 = vmatpush2.bf16.msra.mxu0 %v358
    %405 = vmatprep.subr.bf16.mxu0 0
    %406 = vmatpush2.bf16.msra.mxu0 %v357
    %407 = vmatprep.subr.bf16.mxu0 0
    %408 = vmatpush2.bf16.msra.mxu0 %v356
    %409 = vmatprep.subr.bf16.mxu0 0
    %410 = vmatpush2.bf16.msra.mxu0 %v355
    %411 = vmatprep.mubr.bf16.mxu0 %v243
    %412 = vmatmul.mubr.bf16.gmra.mxu0 %v242
    %v413 = vpop.f32.mrf.mxu0
    %v414 = vadd.f32 %v281, %v413
    %v415 = vpop.f32.mrf.mxu0
    %v416 = vpop.f32.mrf.mxu0
    %v417 = vpop.f32.mrf.mxu0
    %418 = vdwg.mxu0
    %419 = vst [vmem:[#allocation10] sm:$0xff] %v414
    // Predicated region
    $region26: #{tpu_custom_call.1} parent=1 // pred_check
      _
    $region27: #{tpu_custom_call.1} parent=1 // pred_check_branch
      %421 = sbr.rel (0) target = $region29
    $region28: #{tpu_custom_call.1} parent=1 // pred_region
      %s423 = ssub.s32 128, 128
      %424 = vsyncadd [#allocation7], %s423
      %s426 = sshll.u32 [#allocation10], 4
      %s427 = int_to_ptr.vmem [resolvable:$true] %s426
      %429 = dma.vmem_to_hbm [thread:$0]  %s427, 128, %s4, [#allocation7]
    $region29: #{tpu_custom_call.1} parent=1 // pred_fallthru
      _
    // Predicated region
    $region30: #{tpu_custom_call.1} parent=1 // pred_check
      _
    $region31: #{tpu_custom_call.1} parent=1 // pred_check_branch
      %431 = sbr.rel (0) target = $region33
    $region32: #{tpu_custom_call.1} parent=1 // pred_region
      %432 = dma.done [#allocation7], 128
    $region33: #{tpu_custom_call.1} parent=1 // pred_fallthru
      _
    %433 = vsyncpa [#allocation6], 1
    %434 = vsyncpa [#allocation9], 1
    %435 = vsyncpa [#allocation7], 1

</llo_original>
